<compile_context>
chip_gen: v7x
topology: tpu7x:2x2x1
jax: 0.10.0
libtpu: 0.0.40
codegen_flags: <defaults>
</compile_context>

<pallas_src>
import functools

import jax
import jax.numpy as jnp
from jax.experimental import pallas as pl
from jax.experimental.pallas import tpu as pltpu


def _convdw_kernel(x_ref, wdw_ref, b1_ref, wpw_ref, b2_ref, o_ref, *,
                   Ho, Wo, Cin, Cout, stride, use_mxu):
    """One batch element per grid step.

    x_ref  : (stride*stride*Cin, Hph, Wph)  phase-split, zero-padded input
    wdw_ref: (Cin, 3, 3)    depthwise weights with BN1 scale folded in
    b1_ref : (Cin, 1, 1)    folded BN1 bias
    wpw_ref: (Cout, Cin)    pointwise weights with BN2 scale folded in
    b2_ref : (Cout, 1)      folded BN2 bias
    o_ref  : (Cout, Ho*Wo)  flattened-spatial output tile (lane-dense store)
    """
    s = stride
    wdw = wdw_ref[...]                                      # (Cin, 3, 3)

    # ---- depthwise 3x3: 9 contiguous unit-stride taps (VPU FMAs) ----
    # BN1 scale is folded into wdw; start the accumulator at the BN1 bias.
    acc = jnp.broadcast_to(b1_ref[...].astype(jnp.float32), (Cin, Ho, Wo))
    for kh in range(3):
        for kw in range(3):
            p = (kh % s) * s + (kw % s)          # stride phase of this tap
            hs, ws = kh // s, kw // s            # offset inside the phase
            patch = x_ref[p * Cin:(p + 1) * Cin, hs:hs + Ho, ws:ws + Wo]
            w_t = wdw[:, kh:kh + 1, kw:kw + 1]   # (Cin, 1, 1)
            acc = acc + patch.astype(jnp.float32) * w_t
    y = jnp.maximum(acc, 0.0)                    # BN1 + ReLU done

    # ---- pointwise 1x1 conv over channels on flattened spatial positions ----
    y2d = y.reshape(Cin, Ho * Wo)                # (Cin, Ho*Wo)
    wpw = wpw_ref[...].astype(jnp.float32)       # (Cout, Cin)
    if use_mxu:
        # Large channel counts: single-pass bf16 MXU matmul, f32 accumulation.
        z = jnp.dot(wpw.astype(jnp.bfloat16), y2d.astype(jnp.bfloat16),
                    preferred_element_type=jnp.float32)
    else:
        # Tiny K(=Cin)/M(=Cout): skip the MXU, do Cin lane-dense VPU FMAs.
        z = jnp.zeros((Cout, Ho * Wo), jnp.float32)
        for ci in range(Cin):
            z = z + wpw[:, ci:ci + 1] * y2d[ci:ci + 1, :]

    # ---- BN2 (folded) bias + ReLU, single lane-dense store ----
    z = jnp.maximum(z + b2_ref[...], 0.0)
    o_ref[...] = z.astype(o_ref.dtype)


def conv_dw_pallas(x_nchw, w_dw, scale1, bias1, w_pw, scale2, bias2, stride):
    """x_nchw: (N, Cin, H, W). w_dw: (Cin,1,3,3). w_pw: (Cout,Cin,1,1).
    scale*/bias* are the folded inference BatchNorm parameters."""
    N, Cin, H, W = x_nchw.shape
    Cout = w_pw.shape[0]
    s = int(stride)
    assert s in (1, 2), "MobileNet ConvDW uses stride 1 or 2"
    Ho = (H + 2 - 3) // s + 1
    Wo = (W + 2 - 3) // s + 1
    Hph = 2 // s + Ho          # rows each stride-phase must provide
    Wph = 2 // s + Wo          # cols each stride-phase must provide

    # Zero-pad (padding=1) and space-to-depth split into s*s stride phases so
    # every depthwise tap inside the kernel is a contiguous static slice.
    x_pad = jnp.pad(x_nchw, ((0, 0), (0, 0),
                             (1, s * Hph - H - 1), (1, s * Wph - W - 1)))
    xr = x_pad.reshape(N, Cin, Hph, s, Wph, s)
    phases = jnp.transpose(xr, (0, 3, 5, 1, 2, 4)).reshape(
        N, s * s * Cin, Hph, Wph)

    # Fold BN scales into the conv weights (done once in XLA, not per tile).
    wdw_f = (w_dw[:, 0, :, :] * scale1[:, None, None]).astype(jnp.float32)
    b1 = bias1.reshape(Cin, 1, 1).astype(jnp.float32)
    wpw_f = (w_pw[:, :, 0, 0] * scale2[:, None]).astype(jnp.float32)
    b2 = bias2.reshape(Cout, 1).astype(jnp.float32)

    use_mxu = bool(Cin >= 128 and Cout >= 128)
    kernel = functools.partial(_convdw_kernel, Ho=Ho, Wo=Wo, Cin=Cin,
                               Cout=Cout, stride=s, use_mxu=use_mxu)

    out_flat = pl.pallas_call(
        kernel,
        out_shape=jax.ShapeDtypeStruct((N, Cout, Ho * Wo), x_nchw.dtype),
        grid=(N,),
        in_specs=[
            pl.BlockSpec((None, s * s * Cin, Hph, Wph),
                         lambda n: (n, 0, 0, 0)),
            pl.BlockSpec((Cin, 3, 3), lambda n: (0, 0, 0)),
            pl.BlockSpec((Cin, 1, 1), lambda n: (0, 0, 0)),
            pl.BlockSpec((Cout, Cin), lambda n: (0, 0)),
            pl.BlockSpec((Cout, 1), lambda n: (0, 0)),
        ],
        out_specs=pl.BlockSpec((None, Cout, Ho * Wo), lambda n: (n, 0, 0)),
        compiler_params=pltpu.CompilerParams(
            dimension_semantics=("parallel",)),
    )(phases, wdw_f, b1, wpw_f, b2)

    # Flat (N, Cout, Ho*Wo) -> NCHW; contiguous reshape, free in XLA.
    return out_flat.reshape(N, Cout, Ho, Wo)


def conv_dw_reference(x_nchw, w_dw, scale1, bias1, w_pw, scale2, bias2, stride):
    """Pure-JAX reference mirroring the PyTorch forward (inference BN)."""
    N, Cin, H, W = x_nchw.shape
    Ho = (H + 2 - 3) // stride + 1
    Wo = (W + 2 - 3) // stride + 1

    x = jnp.pad(x_nchw, ((0, 0), (0, 0), (1, 1), (1, 1)))
    acc = jnp.zeros((N, Cin, Ho, Wo), jnp.float32)
    for kh in range(3):
        for kw in range(3):
            patch = x[:, :, kh:kh + stride * (Ho - 1) + 1:stride,
                      kw:kw + stride * (Wo - 1) + 1:stride]
            acc = acc + patch * w_dw[None, :, 0, kh, kw, None, None]
    y = jnp.maximum(acc * scale1[None, :, None, None]
                    + bias1[None, :, None, None], 0.0)
    z = jnp.einsum('nchw,oc->nohw', y, w_pw[:, :, 0, 0], precision='highest')
    z = jnp.maximum(z * scale2[None, :, None, None]
                    + bias2[None, :, None, None], 0.0)
    return z


if __name__ == "__main__":
    # Small shapes consistent with the module: N=2, Cin=4, Cout=8, H=W=16.
    N, Cin, Cout, H, W = 2, 4, 8, 16, 16
    eps = 1e-5

    key = jax.random.PRNGKey(0)
    k_x, k_dw, k_pw = jax.random.split(key, 3)

    x = jax.random.normal(k_x, (N, Cin, H, W), jnp.float32)
    w_dw = 0.3 * jax.random.normal(k_dw, (Cin, 1, 3, 3), jnp.float32)
    w_pw = 0.3 * jax.random.normal(k_pw, (Cout, Cin, 1, 1), jnp.float32)

    # Deterministic BatchNorm parameters (inference form), folded to scale/bias.
    gamma1 = 1.0 + 0.10 * jnp.arange(Cin, dtype=jnp.float32)
    beta1 = 0.05 * jnp.arange(Cin, dtype=jnp.float32)
    mean1 = 0.02 * jnp.arange(Cin, dtype=jnp.float32)
    var1 = 1.0 + 0.03 * jnp.arange(Cin, dtype=jnp.float32)
    scale1 = gamma1 / jnp.sqrt(var1 + eps)
    bias1 = beta1 - mean1 * scale1

    gamma2 = 1.0 + 0.07 * jnp.arange(Cout, dtype=jnp.float32)
    beta2 = -0.03 * jnp.arange(Cout, dtype=jnp.float32)
    mean2 = 0.01 * jnp.arange(Cout, dtype=jnp.float32)
    var2 = 1.0 + 0.05 * jnp.arange(Cout, dtype=jnp.float32)
    scale2 = gamma2 / jnp.sqrt(var2 + eps)
    bias2 = beta2 - mean2 * scale2

    # Check both strides the module supports (2 = the original test case).
    for stride in (2, 1):
        out = conv_dw_pallas(x, w_dw, scale1, bias1, w_pw, scale2, bias2,
                             stride)
        out = jax.block_until_ready(out)
        ref = conv_dw_reference(x, w_dw, scale1, bias1, w_pw, scale2, bias2,
                                stride)
        Ho = (H + 2 - 3) // stride + 1
        Wo = (W + 2 - 3) // stride + 1
        assert out.shape == (N, Cout, Ho, Wo), out.shape
        err = jnp.max(jnp.abs(out - ref))
        assert jnp.allclose(out, ref, rtol=1e-3, atol=1e-3), \
            f"stride={stride}: max abs err = {err}"

    print("KERNEL_OK")
</pallas_src>

<mosaic_0001>
module attributes {stable_mosaic.version = 11 : i64} {
  func.func @_convdw_kernel(%arg0: i32, %arg1: memref<1x16x9x9xf32, #tpu.memory_space<vmem>>, %arg2: memref<4x3x3xf32, #tpu.memory_space<vmem>>, %arg3: memref<4x1x1xf32, #tpu.memory_space<vmem>>, %arg4: memref<8x4xf32, #tpu.memory_space<vmem>>, %arg5: memref<8x1xf32, #tpu.memory_space<vmem>>, %arg6: memref<1x8x64xf32, #tpu.memory_space<vmem>>) attributes {dimension_semantics = [#tpu.dimension_semantics<parallel>], iteration_bounds = array<i64: 2>, scalar_prefetch = 0 : i64, scratch_operands = 0 : i64, tpu.core_type = #tpu.core_type<tc>, window_params = [{transform_indices = @transform_0, window_bounds = array<i64: 1, 16, 9, 9>}, {pipeline_mode = #tpu.pipeline_mode<synchronous>, transform_indices = @transform_1, window_bounds = array<i64: 4, 3, 3>}, {pipeline_mode = #tpu.pipeline_mode<synchronous>, transform_indices = @transform_2, window_bounds = array<i64: 4, 1, 1>}, {pipeline_mode = #tpu.pipeline_mode<synchronous>, transform_indices = @transform_3, window_bounds = array<i64: 8, 4>}, {pipeline_mode = #tpu.pipeline_mode<synchronous>, transform_indices = @transform_4, window_bounds = array<i64: 8, 1>}, {transform_indices = @transform_5, window_bounds = array<i64: 1, 8, 64>}]} {
    %c0 = arith.constant 0 : index
    %c0_0 = arith.constant 0 : index
    %c0_1 = arith.constant 0 : index
    %0 = vector.load %arg2[%c0, %c0_0, %c0_1] : memref<4x3x3xf32, #tpu.memory_space<vmem>>, vector<4x3x3xf32>
    %c0_2 = arith.constant 0 : index
    %c0_3 = arith.constant 0 : index
    %c0_4 = arith.constant 0 : index
    %1 = vector.load %arg3[%c0_2, %c0_3, %c0_4] : memref<4x1x1xf32, #tpu.memory_space<vmem>>, vector<4x1x1xf32>
    %2 = vector.shape_cast %1 : vector<4x1x1xf32> to vector<4x1x1xf32>
    %3 = vector.broadcast %2 : vector<4x1x1xf32> to vector<4x8x8xf32>
    %c0_5 = arith.constant 0 : index
    %c0_6 = arith.constant 0 : index
    %c0_7 = arith.constant 0 : index
    %c0_8 = arith.constant 0 : index
    %4 = vector.load %arg1[%c0_5, %c0_6, %c0_7, %c0_8] : memref<1x16x9x9xf32, #tpu.memory_space<vmem>>, vector<1x4x8x8xf32>
    %5 = vector.shape_cast %4 : vector<1x4x8x8xf32> to vector<4x8x8xf32>
    %6 = vector.extract_strided_slice %0 {offsets = [0, 0, 0], sizes = [4, 1, 1], strides = [1, 1, 1]} : vector<4x3x3xf32> to vector<4x1x1xf32>
    %7 = vector.broadcast %6 : vector<4x1x1xf32> to vector<4x8x8xf32>
    %8 = arith.mulf %5, %7 : vector<4x8x8xf32>
    %9 = arith.addf %3, %8 : vector<4x8x8xf32>
    %c0_9 = arith.constant 0 : index
    %c4 = arith.constant 4 : index
    %c0_10 = arith.constant 0 : index
    %c0_11 = arith.constant 0 : index
    %10 = vector.load %arg1[%c0_9, %c4, %c0_10, %c0_11] : memref<1x16x9x9xf32, #tpu.memory_space<vmem>>, vector<1x4x8x8xf32>
    %11 = vector.shape_cast %10 : vector<1x4x8x8xf32> to vector<4x8x8xf32>
    %12 = vector.extract_strided_slice %0 {offsets = [0, 0, 1], sizes = [4, 1, 1], strides = [1, 1, 1]} : vector<4x3x3xf32> to vector<4x1x1xf32>
    %13 = vector.broadcast %12 : vector<4x1x1xf32> to vector<4x8x8xf32>
    %14 = arith.mulf %11, %13 : vector<4x8x8xf32>
    %15 = arith.addf %9, %14 : vector<4x8x8xf32>
    %c0_12 = arith.constant 0 : index
    %c0_13 = arith.constant 0 : index
    %c0_14 = arith.constant 0 : index
    %c1 = arith.constant 1 : index
    %16 = vector.load %arg1[%c0_12, %c0_13, %c0_14, %c1] : memref<1x16x9x9xf32, #tpu.memory_space<vmem>>, vector<1x4x8x8xf32>
    %17 = vector.shape_cast %16 : vector<1x4x8x8xf32> to vector<4x8x8xf32>
    %18 = vector.extract_strided_slice %0 {offsets = [0, 0, 2], sizes = [4, 1, 1], strides = [1, 1, 1]} : vector<4x3x3xf32> to vector<4x1x1xf32>
    %19 = vector.broadcast %18 : vector<4x1x1xf32> to vector<4x8x8xf32>
    %20 = arith.mulf %17, %19 : vector<4x8x8xf32>
    %21 = arith.addf %15, %20 : vector<4x8x8xf32>
    %c0_15 = arith.constant 0 : index
    %c8 = arith.constant 8 : index
    %c0_16 = arith.constant 0 : index
    %c0_17 = arith.constant 0 : index
    %22 = vector.load %arg1[%c0_15, %c8, %c0_16, %c0_17] : memref<1x16x9x9xf32, #tpu.memory_space<vmem>>, vector<1x4x8x8xf32>
    %23 = vector.shape_cast %22 : vector<1x4x8x8xf32> to vector<4x8x8xf32>
    %24 = vector.extract_strided_slice %0 {offsets = [0, 1, 0], sizes = [4, 1, 1], strides = [1, 1, 1]} : vector<4x3x3xf32> to vector<4x1x1xf32>
    %25 = vector.broadcast %24 : vector<4x1x1xf32> to vector<4x8x8xf32>
    %26 = arith.mulf %23, %25 : vector<4x8x8xf32>
    %27 = arith.addf %21, %26 : vector<4x8x8xf32>
    %c0_18 = arith.constant 0 : index
    %c12 = arith.constant 12 : index
    %c0_19 = arith.constant 0 : index
    %c0_20 = arith.constant 0 : index
    %28 = vector.load %arg1[%c0_18, %c12, %c0_19, %c0_20] : memref<1x16x9x9xf32, #tpu.memory_space<vmem>>, vector<1x4x8x8xf32>
    %29 = vector.shape_cast %28 : vector<1x4x8x8xf32> to vector<4x8x8xf32>
    %30 = vector.extract_strided_slice %0 {offsets = [0, 1, 1], sizes = [4, 1, 1], strides = [1, 1, 1]} : vector<4x3x3xf32> to vector<4x1x1xf32>
    %31 = vector.broadcast %30 : vector<4x1x1xf32> to vector<4x8x8xf32>
    %32 = arith.mulf %29, %31 : vector<4x8x8xf32>
    %33 = arith.addf %27, %32 : vector<4x8x8xf32>
    %c0_21 = arith.constant 0 : index
    %c8_22 = arith.constant 8 : index
    %c0_23 = arith.constant 0 : index
    %c1_24 = arith.constant 1 : index
    %34 = vector.load %arg1[%c0_21, %c8_22, %c0_23, %c1_24] : memref<1x16x9x9xf32, #tpu.memory_space<vmem>>, vector<1x4x8x8xf32>
    %35 = vector.shape_cast %34 : vector<1x4x8x8xf32> to vector<4x8x8xf32>
    %36 = vector.extract_strided_slice %0 {offsets = [0, 1, 2], sizes = [4, 1, 1], strides = [1, 1, 1]} : vector<4x3x3xf32> to vector<4x1x1xf32>
    %37 = vector.broadcast %36 : vector<4x1x1xf32> to vector<4x8x8xf32>
    %38 = arith.mulf %35, %37 : vector<4x8x8xf32>
    %39 = arith.addf %33, %38 : vector<4x8x8xf32>
    %c0_25 = arith.constant 0 : index
    %c0_26 = arith.constant 0 : index
    %c1_27 = arith.constant 1 : index
    %c0_28 = arith.constant 0 : index
    %40 = vector.load %arg1[%c0_25, %c0_26, %c1_27, %c0_28] : memref<1x16x9x9xf32, #tpu.memory_space<vmem>>, vector<1x4x8x8xf32>
    %41 = vector.shape_cast %40 : vector<1x4x8x8xf32> to vector<4x8x8xf32>
    %42 = vector.extract_strided_slice %0 {offsets = [0, 2, 0], sizes = [4, 1, 1], strides = [1, 1, 1]} : vector<4x3x3xf32> to vector<4x1x1xf32>
    %43 = vector.broadcast %42 : vector<4x1x1xf32> to vector<4x8x8xf32>
    %44 = arith.mulf %41, %43 : vector<4x8x8xf32>
    %45 = arith.addf %39, %44 : vector<4x8x8xf32>
    %c0_29 = arith.constant 0 : index
    %c4_30 = arith.constant 4 : index
    %c1_31 = arith.constant 1 : index
    %c0_32 = arith.constant 0 : index
    %46 = vector.load %arg1[%c0_29, %c4_30, %c1_31, %c0_32] : memref<1x16x9x9xf32, #tpu.memory_space<vmem>>, vector<1x4x8x8xf32>
    %47 = vector.shape_cast %46 : vector<1x4x8x8xf32> to vector<4x8x8xf32>
    %48 = vector.extract_strided_slice %0 {offsets = [0, 2, 1], sizes = [4, 1, 1], strides = [1, 1, 1]} : vector<4x3x3xf32> to vector<4x1x1xf32>
    %49 = vector.broadcast %48 : vector<4x1x1xf32> to vector<4x8x8xf32>
    %50 = arith.mulf %47, %49 : vector<4x8x8xf32>
    %51 = arith.addf %45, %50 : vector<4x8x8xf32>
    %c0_33 = arith.constant 0 : index
    %c0_34 = arith.constant 0 : index
    %c1_35 = arith.constant 1 : index
    %c1_36 = arith.constant 1 : index
    %52 = vector.load %arg1[%c0_33, %c0_34, %c1_35, %c1_36] : memref<1x16x9x9xf32, #tpu.memory_space<vmem>>, vector<1x4x8x8xf32>
    %53 = vector.shape_cast %52 : vector<1x4x8x8xf32> to vector<4x8x8xf32>
    %54 = vector.extract_strided_slice %0 {offsets = [0, 2, 2], sizes = [4, 1, 1], strides = [1, 1, 1]} : vector<4x3x3xf32> to vector<4x1x1xf32>
    %55 = vector.broadcast %54 : vector<4x1x1xf32> to vector<4x8x8xf32>
    %56 = arith.mulf %53, %55 : vector<4x8x8xf32>
    %57 = arith.addf %51, %56 : vector<4x8x8xf32>
    %cst = arith.constant 0.000000e+00 : f32
    %58 = vector.broadcast %cst : f32 to vector<4x8x8xf32>
    %59 = arith.maximumf %57, %58 : vector<4x8x8xf32>
    %60 = vector.shape_cast %59 : vector<4x8x8xf32> to vector<4x64xf32>
    %c0_37 = arith.constant 0 : index
    %c0_38 = arith.constant 0 : index
    %61 = vector.load %arg4[%c0_37, %c0_38] : memref<8x4xf32, #tpu.memory_space<vmem>>, vector<8x4xf32>
    %cst_39 = arith.constant 0.000000e+00 : f32
    %62 = vector.broadcast %cst_39 : f32 to vector<8x64xf32>
    %63 = vector.extract_strided_slice %61 {offsets = [0, 0], sizes = [8, 1], strides = [1, 1]} : vector<8x4xf32> to vector<8x1xf32>
    %64 = vector.extract_strided_slice %60 {offsets = [0, 0], sizes = [1, 64], strides = [1, 1]} : vector<4x64xf32> to vector<1x64xf32>
    %65 = vector.broadcast %63 : vector<8x1xf32> to vector<8x64xf32>
    %66 = vector.broadcast %64 : vector<1x64xf32> to vector<8x64xf32>
    %67 = arith.mulf %65, %66 : vector<8x64xf32>
    %68 = arith.addf %62, %67 : vector<8x64xf32>
    %69 = vector.extract_strided_slice %61 {offsets = [0, 1], sizes = [8, 1], strides = [1, 1]} : vector<8x4xf32> to vector<8x1xf32>
    %70 = vector.extract_strided_slice %60 {offsets = [1, 0], sizes = [1, 64], strides = [1, 1]} : vector<4x64xf32> to vector<1x64xf32>
    %71 = vector.broadcast %69 : vector<8x1xf32> to vector<8x64xf32>
    %72 = vector.broadcast %70 : vector<1x64xf32> to vector<8x64xf32>
    %73 = arith.mulf %71, %72 : vector<8x64xf32>
    %74 = arith.addf %68, %73 : vector<8x64xf32>
    %75 = vector.extract_strided_slice %61 {offsets = [0, 2], sizes = [8, 1], strides = [1, 1]} : vector<8x4xf32> to vector<8x1xf32>
    %76 = vector.extract_strided_slice %60 {offsets = [2, 0], sizes = [1, 64], strides = [1, 1]} : vector<4x64xf32> to vector<1x64xf32>
    %77 = vector.broadcast %75 : vector<8x1xf32> to vector<8x64xf32>
    %78 = vector.broadcast %76 : vector<1x64xf32> to vector<8x64xf32>
    %79 = arith.mulf %77, %78 : vector<8x64xf32>
    %80 = arith.addf %74, %79 : vector<8x64xf32>
    %81 = vector.extract_strided_slice %61 {offsets = [0, 3], sizes = [8, 1], strides = [1, 1]} : vector<8x4xf32> to vector<8x1xf32>
    %82 = vector.extract_strided_slice %60 {offsets = [3, 0], sizes = [1, 64], strides = [1, 1]} : vector<4x64xf32> to vector<1x64xf32>
    %83 = vector.broadcast %81 : vector<8x1xf32> to vector<8x64xf32>
    %84 = vector.broadcast %82 : vector<1x64xf32> to vector<8x64xf32>
    %85 = arith.mulf %83, %84 : vector<8x64xf32>
    %86 = arith.addf %80, %85 : vector<8x64xf32>
    %c0_40 = arith.constant 0 : index
    %c0_41 = arith.constant 0 : index
    %87 = vector.load %arg5[%c0_40, %c0_41] : memref<8x1xf32, #tpu.memory_space<vmem>>, vector<8x1xf32>
    %88 = vector.broadcast %87 : vector<8x1xf32> to vector<8x64xf32>
    %89 = arith.addf %86, %88 : vector<8x64xf32>
    %cst_42 = arith.constant 0.000000e+00 : f32
    %90 = vector.broadcast %cst_42 : f32 to vector<8x64xf32>
    %91 = arith.maximumf %89, %90 : vector<8x64xf32>
    %c0_43 = arith.constant 0 : index
    %c0_44 = arith.constant 0 : index
    %c0_45 = arith.constant 0 : index
    %92 = vector.load %arg6[%c0_43, %c0_44, %c0_45] : memref<1x8x64xf32, #tpu.memory_space<vmem>>, vector<1x8x64xf32>
    %93 = vector.shape_cast %92 : vector<1x8x64xf32> to vector<8x64xf32>
    %94 = vector.shape_cast %91 : vector<8x64xf32> to vector<1x8x64xf32>
    tpu.vector_store %arg6[%c0_43, %c0_44, %c0_45], %94 {strides = array<i32>} : memref<1x8x64xf32, #tpu.memory_space<vmem>>, vector<1x8x64xf32>,
    return
  }
  func.func @transform_0(%arg0: i32) -> (i32, i32, i32, i32) {
    %c0_i32 = arith.constant 0 : i32
    %c0_i32_0 = arith.constant 0 : i32
    %c0_i32_1 = arith.constant 0 : i32
    %c0_i32_2 = arith.constant 0 : i32
    return %arg0, %c0_i32, %c0_i32_0, %c0_i32_1 : i32, i32, i32, i32
  }
  func.func @transform_1(%arg0: i32) -> (i32, i32, i32) {
    %c0_i32 = arith.constant 0 : i32
    %c0_i32_0 = arith.constant 0 : i32
    %c0_i32_1 = arith.constant 0 : i32
    %c0_i32_2 = arith.constant 0 : i32
    return %c0_i32, %c0_i32_0, %c0_i32_1 : i32, i32, i32
  }
  func.func @transform_2(%arg0: i32) -> (i32, i32, i32) {
    %c0_i32 = arith.constant 0 : i32
    %c0_i32_0 = arith.constant 0 : i32
    %c0_i32_1 = arith.constant 0 : i32
    %c0_i32_2 = arith.constant 0 : i32
    return %c0_i32, %c0_i32_0, %c0_i32_1 : i32, i32, i32
  }
  func.func @transform_3(%arg0: i32) -> (i32, i32) {
    %c0_i32 = arith.constant 0 : i32
    %c0_i32_0 = arith.constant 0 : i32
    %c0_i32_1 = arith.constant 0 : i32
    return %c0_i32, %c0_i32_0 : i32, i32
  }
  func.func @transform_4(%arg0: i32) -> (i32, i32) {
    %c0_i32 = arith.constant 0 : i32
    %c0_i32_0 = arith.constant 0 : i32
    %c0_i32_1 = arith.constant 0 : i32
    return %c0_i32, %c0_i32_0 : i32, i32
  }
  func.func @transform_5(%arg0: i32) -> (i32, i32, i32) {
    %c0_i32 = arith.constant 0 : i32
    %c0_i32_0 = arith.constant 0 : i32
    %c0_i32_1 = arith.constant 0 : i32
    return %arg0, %c0_i32, %c0_i32_0 : i32, i32, i32
  }
}

</mosaic_0001>

<llo_original>
// kernel: tpu_custom_call.1
$region0: #{tpu_custom_call.1}
  #allocation0 [shape = 'u32[]', space=smem, size = 0x4, offset = 0x4, fixed_abs, tag = 'smem constant byte address 0x4 - core index']
  #allocation1 [shape = 'u32[144,128]{1,0:T(1,128)}', space=vmem, size = 0x12000, scoped, tag = 'internal scratch']
  %s0 = inlined_call_operand.vmem [shape: f32[2,16,9,9], index: 0, kind: input, shape index: {}]
  %s1 = inlined_call_operand.vmem [shape: f32[4,3,3], index: 1, kind: input, shape index: {}]
  %s2 = inlined_call_operand.vmem [shape: f32[4,1,1], index: 2, kind: input, shape index: {}]
  %s3 = inlined_call_operand.vmem [shape: f32[8,4], index: 3, kind: input, shape index: {}]
  %s4 = inlined_call_operand.vmem [shape: f32[8,1], index: 4, kind: input, shape index: {}]
  %s5 = inlined_call_operand.hbm [shape: f32[2,8,64], index: 5, kind: output, shape index: {}]
  %s6 = sld [smem:[#allocation0]]
  $region53: #{tpu_custom_call.1} parent=0
    _
  %s8 = ssub.s32 1, %s6
  %s9 = scalar_select 0, %s8, %s6
  $region1: #{tpu_custom_call.1} parent=0
    #allocation2 [shape = 'u8[8192]{0}', space=vmem, size = 0x2000, scoped, tag = 'output window, operand 0']
    #allocation3 [shape = 's32[2]{0}', space=sflag, size = 0x8, scoped, tag = 'scoped memory for tpu_custom_call.1']
    %10 = vsyncpa [#allocation3], 0
    %s11 = scalar_lea.sflag [#allocation3], 1
    %12 = vsyncpa %s11, 0
    loop: start=0, step=1, limit=4
    $region2: #{tpu_custom_call.1} parent=1 // loop_pre_header
      _
    $region3: #{tpu_custom_call.1} parent=1 // loop_header
      %s14 = sphi 0, %s18
      %p15 = scmp.ge.s32.totalorder %s14, 4
      %s24 = sphi 0, %s26
      %s27 = sphi 0, %s24
      %s28 = sphi 0, %s27
      %s44 = sphi 0, %s28
      %s48 = sphi 0, %s48
      %s50 = sphi 0, %s48
      %s51 = sphi 0, %s50
      %s65 = sphi 0, %s51
      %s69 = sphi 0, %s69
      %s71 = sphi 0, %s69
      %s72 = sphi 0, %s71
      %s86 = sphi 0, %s72
      %s90 = sphi 0, %s90
      %s92 = sphi 0, %s90
      %s93 = sphi 0, %s92
      %s107 = sphi 0, %s93
      %s111 = sphi 0, %s111
      %s113 = sphi 0, %s111
      %s114 = sphi 0, %s113
      %s128 = sphi 0, %s114
      %s134 = sphi 0, %s136
      %s137 = sphi 0, %s134
      %s138 = sphi 0, %s137
      %s154 = sphi 0, %s138
    $region4: #{tpu_custom_call.1} parent=1 // loop_header_branch
      %17 = sbr.rel (%p15) target = $region8
    $region5: #{tpu_custom_call.1} parent=1 // loop_body
      %s19 = ssub.s32 %s14, 1
      %s20 = ssub.s32 %s14, 2
      %s21 = sadd.s32 %s14, 1
      %s22 = ssub.s32 %s14, %s21
      %p23 = scmp.eq.s32.totalorder %s22, 0
      %s25 = sadd.s32 %s24, 1
      %s26 = scalar_select %p23, %s24, %s25
      %p29 = pneg %p23
      %p30 = scmp.eq.s32.totalorder %s14, 1
      %p31 = por %p29, %p30
      %p32 = scmp.ne.s32.totalorder %s24, %s27
      %p33 = scmp.eq.s32.totalorder %s14, 0
      %p34 = por %p32, %p33
      %p35 = scmp.ne.s32.totalorder %s24, %s27
      %p36 = scmp.eq.s32.totalorder %s19, 1
      %p37 = por %p35, %p36
      %p38 = scmp.ne.s32.totalorder %s27, %s28
      %p39 = scmp.eq.s32.totalorder %s19, 0
      %p40 = por %p38, %p39
      %p41 = scmp.ne.s32.totalorder %s27, %s28
      %p42 = scmp.eq.s32.totalorder %s20, 1
      %p43 = por %p41, %p42
      %p45 = scmp.ne.s32.totalorder %s28, %s44
      %p46 = scmp.eq.s32.totalorder %s20, 0
      %p47 = por %p45, %p46
      %s49 = sadd.s32 %s48, 1
      %p52 = scmp.eq.s32.totalorder %s14, 1
      %p53 = scmp.ne.s32.totalorder %s48, %s50
      %p54 = scmp.eq.s32.totalorder %s14, 0
      %p55 = por %p53, %p54
      %p56 = scmp.ne.s32.totalorder %s48, %s50
      %p57 = scmp.eq.s32.totalorder %s19, 1
      %p58 = por %p56, %p57
      %p59 = scmp.ne.s32.totalorder %s50, %s51
      %p60 = scmp.eq.s32.totalorder %s19, 0
      %p61 = por %p59, %p60
      %p62 = scmp.ne.s32.totalorder %s50, %s51
      %p63 = scmp.eq.s32.totalorder %s20, 1
      %p64 = por %p62, %p63
      %p66 = scmp.ne.s32.totalorder %s51, %s65
      %p67 = scmp.eq.s32.totalorder %s20, 0
      %p68 = por %p66, %p67
      %s70 = sadd.s32 %s69, 1
      %p73 = scmp.eq.s32.totalorder %s14, 1
      %p74 = scmp.ne.s32.totalorder %s69, %s71
      %p75 = scmp.eq.s32.totalorder %s14, 0
      %p76 = por %p74, %p75
      %p77 = scmp.ne.s32.totalorder %s69, %s71
      %p78 = scmp.eq.s32.totalorder %s19, 1
      %p79 = por %p77, %p78
      %p80 = scmp.ne.s32.totalorder %s71, %s72
      %p81 = scmp.eq.s32.totalorder %s19, 0
      %p82 = por %p80, %p81
      %p83 = scmp.ne.s32.totalorder %s71, %s72
      %p84 = scmp.eq.s32.totalorder %s20, 1
      %p85 = por %p83, %p84
      %p87 = scmp.ne.s32.totalorder %s72, %s86
      %p88 = scmp.eq.s32.totalorder %s20, 0
      %p89 = por %p87, %p88
      %s91 = sadd.s32 %s90, 1
      %p94 = scmp.eq.s32.totalorder %s14, 1
      %p95 = scmp.ne.s32.totalorder %s90, %s92
      %p96 = scmp.eq.s32.totalorder %s14, 0
      %p97 = por %p95, %p96
      %p98 = scmp.ne.s32.totalorder %s90, %s92
      %p99 = scmp.eq.s32.totalorder %s19, 1
      %p100 = por %p98, %p99
      %p101 = scmp.ne.s32.totalorder %s92, %s93
      %p102 = scmp.eq.s32.totalorder %s19, 0
      %p103 = por %p101, %p102
      %p104 = scmp.ne.s32.totalorder %s92, %s93
      %p105 = scmp.eq.s32.totalorder %s20, 1
      %p106 = por %p104, %p105
      %p108 = scmp.ne.s32.totalorder %s93, %s107
      %p109 = scmp.eq.s32.totalorder %s20, 0
      %p110 = por %p108, %p109
      %s112 = sadd.s32 %s111, 1
      %p115 = scmp.eq.s32.totalorder %s14, 1
      %p116 = scmp.ne.s32.totalorder %s111, %s113
      %p117 = scmp.eq.s32.totalorder %s14, 0
      %p118 = por %p116, %p117
      %p119 = scmp.ne.s32.totalorder %s111, %s113
      %p120 = scmp.eq.s32.totalorder %s19, 1
      %p121 = por %p119, %p120
      %p122 = scmp.ne.s32.totalorder %s113, %s114
      %p123 = scmp.eq.s32.totalorder %s19, 0
      %p124 = por %p122, %p123
      %p125 = scmp.ne.s32.totalorder %s113, %s114
      %p126 = scmp.eq.s32.totalorder %s20, 1
      %p127 = por %p125, %p126
      %p129 = scmp.ne.s32.totalorder %s114, %s128
      %p130 = scmp.eq.s32.totalorder %s20, 0
      %p131 = por %p129, %p130
      %s132 = ssub.s32 %s14, %s21
      %p133 = scmp.eq.s32.totalorder %s132, 0
      %s135 = sadd.s32 %s134, 1
      %s136 = scalar_select %p133, %s134, %s135
      %p139 = pneg %p133
      %p140 = scmp.eq.s32.totalorder %s14, 1
      %p141 = por %p139, %p140
      %p142 = scmp.ne.s32.totalorder %s134, %s137
      %p143 = scmp.eq.s32.totalorder %s14, 0
      %p144 = por %p142, %p143
      %p145 = scmp.ne.s32.totalorder %s134, %s137
      %p146 = scmp.eq.s32.totalorder %s19, 1
      %p147 = por %p145, %p146
      %p148 = scmp.ne.s32.totalorder %s137, %s138
      %p149 = scmp.eq.s32.totalorder %s19, 0
      %p150 = por %p148, %p149
      %p151 = scmp.ne.s32.totalorder %s137, %s138
      %p152 = scmp.eq.s32.totalorder %s20, 1
      %p153 = por %p151, %p152
      %p155 = scmp.ne.s32.totalorder %s138, %s154
      %p156 = scmp.eq.s32.totalorder %s20, 0
      %p157 = por %p155, %p156
      %p158 = scmp.le.s32.totalorder 1, %s14
      %p159 = scmp.lt.s32.totalorder %s14, 3
      %p160 = pnand %p158, %p159
      %p161 = pneg %p160
      // Predicated region
      $region9: #{tpu_custom_call.1} parent=5 // pred_check
        _
      $region10: #{tpu_custom_call.1} parent=5 // pred_check_branch
        %163 = sbr.rel (%p160) target = $region12
      $region11: #{tpu_custom_call.1} parent=5 // pred_region
        %s164 = ssub.s32 %s14, 1
        // Predicated region
        $region13: #{tpu_custom_call.1} parent=11 // pred_check
          %p165 = pneg %p61
        $region14: #{tpu_custom_call.1} parent=11 // pred_check_branch
          %167 = sbr.rel (%p165) target = $region16
        $region15: #{tpu_custom_call.1} parent=11 // pred_region
          _
        $region16: #{tpu_custom_call.1} parent=11 // pred_fallthru
          _
        // Predicated region
        $region17: #{tpu_custom_call.1} parent=11 // pred_check
          %p168 = pneg %p82
        $region18: #{tpu_custom_call.1} parent=11 // pred_check_branch
          %170 = sbr.rel (%p168) target = $region20
        $region19: #{tpu_custom_call.1} parent=11 // pred_region
          _
        $region20: #{tpu_custom_call.1} parent=11 // pred_fallthru
          _
        // Predicated region
        $region21: #{tpu_custom_call.1} parent=11 // pred_check
          %p171 = pneg %p103
        $region22: #{tpu_custom_call.1} parent=11 // pred_check_branch
          %173 = sbr.rel (%p171) target = $region24
        $region23: #{tpu_custom_call.1} parent=11 // pred_region
          _
        $region24: #{tpu_custom_call.1} parent=11 // pred_fallthru
          _
        // Predicated region
        $region25: #{tpu_custom_call.1} parent=11 // pred_check
          %p174 = pneg %p124
        $region26: #{tpu_custom_call.1} parent=11 // pred_check_branch
          %176 = sbr.rel (%p174) target = $region28
        $region27: #{tpu_custom_call.1} parent=11 // pred_region
          _
        $region28: #{tpu_custom_call.1} parent=11 // pred_fallthru
          _
      $region12: #{tpu_custom_call.1} parent=5 // pred_fallthru
        _
      %p177 = scmp.lt.s32.totalorder %s14, 2
      // Predicated region
      $region29: #{tpu_custom_call.1} parent=5 // pred_check
        %p178 = pneg %p177
      $region30: #{tpu_custom_call.1} parent=5 // pred_check_branch
        %180 = sbr.rel (%p178) target = $region32
      $region31: #{tpu_custom_call.1} parent=5 // pred_region
        // Predicated region
        $region33: #{tpu_custom_call.1} parent=31 // pred_check
          %p181 = pneg %p34
        $region34: #{tpu_custom_call.1} parent=31 // pred_check_branch
          %183 = sbr.rel (%p181) target = $region36
        $region35: #{tpu_custom_call.1} parent=31 // pred_region
          %p184 = scmp.lt.s32.totalorder %s14, 1
          %s185 = scalar_select %p184, %s14, 1
          %s186 = smul.addr %s185, 32
          %s187 = smul.addr %s186, 8
          %s188 = scalar_lea.vmem %s0, %s187
        $region36: #{tpu_custom_call.1} parent=31 // pred_fallthru
          _
      $region32: #{tpu_custom_call.1} parent=5 // pred_fallthru
        _
      %p189 = scmp.le.s32.totalorder 1, %s14
      %p190 = scmp.lt.s32.totalorder %s14, 3
      %p191 = pnand %p189, %p190
      %p192 = pneg %p191
      // Predicated region
      $region37: #{tpu_custom_call.1} parent=5 // pred_check
        _
      $region38: #{tpu_custom_call.1} parent=5 // pred_check_branch
        %194 = sbr.rel (%p191) target = $region40
      $region39: #{tpu_custom_call.1} parent=5 // pred_region
        %s195 = ssub.s32 %s14, 1
        %p196 = scmp.lt.s32.totalorder %s19, 1
        %s197 = scalar_select %p196, %s19, 1
        %s198 = smul.addr %s197, 32
        %s199 = smul.addr %s198, 8
        %s200 = scalar_lea.vmem %s0, %s199
        %p201 = pneg %p40
        %p202 = pneg %p37
        %p203 = pneg %p61
        %p204 = pneg %p58
        %p205 = pneg %p82
        %p206 = pneg %p79
        %p207 = pneg %p103
        %p208 = pneg %p100
        %p209 = pneg %p124
        %p210 = pneg %p121
        %p211 = pneg %p150
        %p212 = pneg %p147
        %s213 = sand.u32 %s137, 1
        %s214 = scalar_lea.sflag [#allocation3], %s213
        %s215 = sand.u32 %s137, 1
        %s216 = smul.addr %s215, 8
        %s217 = scalar_lea.vmem [#allocation2], %s216
        %p218 = scmp.lt.s32.totalorder %s19, 1
        %s219 = scalar_select %p218, %s19, 1
        %s220 = smul.addr %s219, 32
        %s221 = smul.addr %s220, 8
        %s222 = scalar_lea.vmem %s0, %s221
        %v223 = vld [vmem:[%s1] sm:$0x7]
        %v224 = vld [vmem:[%s1 + $0x4] sm:$0x7]
        %v225 = vld [vmem:[%s1 + $0x8] sm:$0x7]
        %v226 = vld [vmem:[%s1 + $0xc] sm:$0x7]
        %v227 = vld [vmem:[%s2] sm:$0x1]
        %v228 = vld [vmem:[%s2 + $0x1] sm:$0x1]
        %v229 = vld [vmem:[%s2 + $0x2] sm:$0x1]
        %v230 = vld [vmem:[%s2 + $0x3] sm:$0x1]
        %v235 = vlaneseq
        %v236 = vshrl.u32 %v235, 7
        %v237 = vsub.s32 0, %v236
        %v238 = vrot.slane %v227, %v237
        %v239 = vlaneseq
        %v240 = vshrl.u32 %v239, 7
        %v241 = vsub.s32 0, %v240
        %v242 = vrot.slane %v228, %v241
        %v243 = vlaneseq
        %v244 = vshrl.u32 %v243, 7
        %v245 = vsub.s32 0, %v244
        %v246 = vrot.slane %v229, %v245
        %v247 = vlaneseq
        %v248 = vshrl.u32 %v247, 7
        %v249 = vsub.s32 0, %v248
        %v250 = vrot.slane %v230, %v249
        %251 = vset.pattern.permute.xlu0 0
        %252 = vperm.xlu0 %251, %v238
        %v253 = vpop.permute.xlu0 %252
        %255 = vset.pattern.permute.xlu0 0
        %256 = vperm.xlu0 %255, %v242
        %v257 = vpop.permute.xlu0 %256
        %259 = vset.pattern.permute.xlu0 0
        %260 = vperm.xlu0 %259, %v246
        %v261 = vpop.permute.xlu0 %260
        %263 = vset.pattern.permute.xlu0 0
        %264 = vperm.xlu0 %263, %v250
        %v265 = vpop.permute.xlu0 %264
        %v267 = vld [vmem:[%s222] sm:$0xff]
        %v268 = vld [vmem:[%s222 + $0x10] sm:$0xff]
        %v269 = vld [vmem:[%s222 + $0x20] sm:$0xff]
        %v270 = vld [vmem:[%s222 + $0x30] sm:$0xff]
        %s272 = vtos %v223
        %v273 = vstv %s272
        %s276 = vtos %v224
        %v277 = vstv %s276
        %s280 = vtos %v225
        %v281 = vstv %s280
        %s284 = vtos %v226
        %v285 = vstv %s284
        %v287 = vmul.f32 %v267, %v273
        %v288 = vmul.f32 %v268, %v277
        %v289 = vmul.f32 %v269, %v281
        %v290 = vmul.f32 %v270, %v285
        %v291 = vadd.f32 %v253, %v287
        %v292 = vadd.f32 %v257, %v288
        %v293 = vadd.f32 %v261, %v289
        %v294 = vadd.f32 %v265, %v290
        %s295 = scalar_lea.vmem %s222, 64
        %v296 = vld [vmem:[%s295] sm:$0xff]
        %v297 = vld [vmem:[%s295 + $0x10] sm:$0xff]
        %v298 = vld [vmem:[%s295 + $0x20] sm:$0xff]
        %v299 = vld [vmem:[%s295 + $0x30] sm:$0xff]
        %300 = vrot.lane.b32.xlu0 %v223, 127
        %v301 = vpop.permute.xlu0 %300
        %302 = vrot.lane.b32.xlu0 %v224, 127
        %v303 = vpop.permute.xlu0 %302
        %304 = vrot.lane.b32.xlu0 %v225, 127
        %v305 = vpop.permute.xlu0 %304
        %306 = vrot.lane.b32.xlu0 %v226, 127
        %v307 = vpop.permute.xlu0 %306
        %s308 = vtos %v301
        %v309 = vstv %s308
        %s311 = vtos %v303
        %v312 = vstv %s311
        %s314 = vtos %v305
        %v315 = vstv %s314
        %s317 = vtos %v307
        %v318 = vstv %s317
        %v320 = vmul.f32 %v296, %v309
        %v321 = vmul.f32 %v297, %v312
        %v322 = vmul.f32 %v298, %v315
        %v323 = vmul.f32 %v299, %v318
        %v324 = vadd.f32 %v291, %v320
        %v325 = vadd.f32 %v292, %v321
        %v326 = vadd.f32 %v293, %v322
        %v327 = vadd.f32 %v294, %v323
        %328 = vrot.lane.b32.xlu0 %v223, 126
        %v329 = vpop.permute.xlu0 %328
        %330 = vrot.lane.b32.xlu0 %v224, 126
        %v331 = vpop.permute.xlu0 %330
        %332 = vrot.lane.b32.xlu0 %v225, 126
        %v333 = vpop.permute.xlu0 %332
        %334 = vrot.lane.b32.xlu0 %v226, 126
        %v335 = vpop.permute.xlu0 %334
        %s336 = vtos %v329
        %v337 = vstv %s336
        %s339 = vtos %v331
        %v340 = vstv %s339
        %s342 = vtos %v333
        %v343 = vstv %s342
        %s345 = vtos %v335
        %v346 = vstv %s345
        %v348 = vmul.f32 %v267, %v337
        %v349 = vmul.f32 %v268, %v340
        %v350 = vmul.f32 %v269, %v343
        %v351 = vmul.f32 %v270, %v346
        %356 = vrot.lane.b32.xlu0 %v348, 127
        %v357 = vpop.permute.xlu0 %356
        %358 = vrot.lane.b32.xlu0 %v349, 127
        %v359 = vpop.permute.xlu0 %358
        %360 = vrot.lane.b32.xlu0 %v350, 127
        %v361 = vpop.permute.xlu0 %360
        %362 = vrot.lane.b32.xlu0 %v351, 127
        %v363 = vpop.permute.xlu0 %362
        %v368 = vadd.f32 %v324, %v357
        %v369 = vadd.f32 %v325, %v359
        %v370 = vadd.f32 %v326, %v361
        %v371 = vadd.f32 %v327, %v363
        %s372 = scalar_lea.vmem %s222, 128
        %v373 = vld [vmem:[%s372] sm:$0xff]
        %v374 = vld [vmem:[%s372 + $0x10] sm:$0xff]
        %v375 = vld [vmem:[%s372 + $0x20] sm:$0xff]
        %v376 = vld [vmem:[%s372 + $0x30] sm:$0xff]
        %v377 = vrot.slane %v223, 1
        %v378 = vrot.slane %v224, 1
        %v379 = vrot.slane %v225, 1
        %v380 = vrot.slane %v226, 1
        %s381 = vtos %v377
        %v382 = vstv %s381
        %s384 = vtos %v378
        %v385 = vstv %s384
        %s387 = vtos %v379
        %v388 = vstv %s387
        %s390 = vtos %v380
        %v391 = vstv %s390
        %v393 = vmul.f32 %v373, %v382
        %v394 = vmul.f32 %v374, %v385
        %v395 = vmul.f32 %v375, %v388
        %v396 = vmul.f32 %v376, %v391
        %v397 = vadd.f32 %v368, %v393
        %v398 = vadd.f32 %v369, %v394
        %v399 = vadd.f32 %v370, %v395
        %v400 = vadd.f32 %v371, %v396
        %s401 = scalar_lea.vmem %s222, 192
        %v402 = vld [vmem:[%s401] sm:$0xff]
        %v403 = vld [vmem:[%s401 + $0x10] sm:$0xff]
        %v404 = vld [vmem:[%s401 + $0x20] sm:$0xff]
        %v405 = vld [vmem:[%s401 + $0x30] sm:$0xff]
        %406 = vrot.lane.b32.xlu0 %v377, 127
        %v407 = vpop.permute.xlu0 %406
        %408 = vrot.lane.b32.xlu0 %v378, 127
        %v409 = vpop.permute.xlu0 %408
        %410 = vrot.lane.b32.xlu0 %v379, 127
        %v411 = vpop.permute.xlu0 %410
        %412 = vrot.lane.b32.xlu0 %v380, 127
        %v413 = vpop.permute.xlu0 %412
        %s414 = vtos %v407
        %v415 = vstv %s414
        %s417 = vtos %v409
        %v418 = vstv %s417
        %s420 = vtos %v411
        %v421 = vstv %s420
        %s423 = vtos %v413
        %v424 = vstv %s423
        %v426 = vmul.f32 %v402, %v415
        %v427 = vmul.f32 %v403, %v418
        %v428 = vmul.f32 %v404, %v421
        %v429 = vmul.f32 %v405, %v424
        %v430 = vadd.f32 %v397, %v426
        %v431 = vadd.f32 %v398, %v427
        %v432 = vadd.f32 %v399, %v428
        %v433 = vadd.f32 %v400, %v429
        %434 = vrot.lane.b32.xlu0 %v377, 126
        %v435 = vpop.permute.xlu0 %434
        %436 = vrot.lane.b32.xlu0 %v378, 126
        %v437 = vpop.permute.xlu0 %436
        %438 = vrot.lane.b32.xlu0 %v379, 126
        %v439 = vpop.permute.xlu0 %438
        %440 = vrot.lane.b32.xlu0 %v380, 126
        %v441 = vpop.permute.xlu0 %440
        %s442 = vtos %v435
        %v443 = vstv %s442
        %s445 = vtos %v437
        %v446 = vstv %s445
        %s448 = vtos %v439
        %v449 = vstv %s448
        %s451 = vtos %v441
        %v452 = vstv %s451
        %v454 = vmul.f32 %v373, %v443
        %v455 = vmul.f32 %v374, %v446
        %v456 = vmul.f32 %v375, %v449
        %v457 = vmul.f32 %v376, %v452
        %462 = vrot.lane.b32.xlu0 %v454, 127
        %v463 = vpop.permute.xlu0 %462
        %464 = vrot.lane.b32.xlu0 %v455, 127
        %v465 = vpop.permute.xlu0 %464
        %466 = vrot.lane.b32.xlu0 %v456, 127
        %v467 = vpop.permute.xlu0 %466
        %468 = vrot.lane.b32.xlu0 %v457, 127
        %v469 = vpop.permute.xlu0 %468
        %v474 = vadd.f32 %v430, %v463
        %v475 = vadd.f32 %v431, %v465
        %v476 = vadd.f32 %v432, %v467
        %v477 = vadd.f32 %v433, %v469
        %v478 = vld [vmem:[%s222 + $0x1] sm:$0xff]
        %v479 = vld [vmem:[%s222 + $0x11] sm:$0xff]
        %v480 = vld [vmem:[%s222 + $0x21] sm:$0xff]
        %v481 = vld [vmem:[%s222 + $0x31] sm:$0xff]
        %v482 = vrot.slane %v223, 2
        %v483 = vrot.slane %v224, 2
        %v484 = vrot.slane %v225, 2
        %v485 = vrot.slane %v226, 2
        %s486 = vtos %v482
        %v487 = vstv %s486
        %s489 = vtos %v483
        %v490 = vstv %s489
        %s492 = vtos %v484
        %v493 = vstv %s492
        %s495 = vtos %v485
        %v496 = vstv %s495
        %v498 = vmul.f32 %v478, %v487
        %v499 = vmul.f32 %v479, %v490
        %v500 = vmul.f32 %v480, %v493
        %v501 = vmul.f32 %v481, %v496
        %v502 = vadd.f32 %v474, %v498
        %v503 = vadd.f32 %v475, %v499
        %v504 = vadd.f32 %v476, %v500
        %v505 = vadd.f32 %v477, %v501
        %v506 = vld [vmem:[%s295 + $0x1] sm:$0xff]
        %v507 = vld [vmem:[%s295 + $0x11] sm:$0xff]
        %v508 = vld [vmem:[%s295 + $0x21] sm:$0xff]
        %v509 = vld [vmem:[%s295 + $0x31] sm:$0xff]
        %510 = vrot.lane.b32.xlu0 %v482, 127
        %v511 = vpop.permute.xlu0 %510
        %512 = vrot.lane.b32.xlu0 %v483, 127
        %v513 = vpop.permute.xlu0 %512
        %514 = vrot.lane.b32.xlu0 %v484, 127
        %v515 = vpop.permute.xlu0 %514
        %516 = vrot.lane.b32.xlu0 %v485, 127
        %v517 = vpop.permute.xlu0 %516
        %s518 = vtos %v511
        %v519 = vstv %s518
        %s521 = vtos %v513
        %v522 = vstv %s521
        %s524 = vtos %v515
        %v525 = vstv %s524
        %s527 = vtos %v517
        %v528 = vstv %s527
        %v530 = vmul.f32 %v506, %v519
        %v531 = vmul.f32 %v507, %v522
        %v532 = vmul.f32 %v508, %v525
        %v533 = vmul.f32 %v509, %v528
        %v534 = vadd.f32 %v502, %v530
        %v535 = vadd.f32 %v503, %v531
        %v536 = vadd.f32 %v504, %v532
        %v537 = vadd.f32 %v505, %v533
        %538 = vrot.lane.b32.xlu0 %v482, 126
        %v539 = vpop.permute.xlu0 %538
        %540 = vrot.lane.b32.xlu0 %v483, 126
        %v541 = vpop.permute.xlu0 %540
        %542 = vrot.lane.b32.xlu0 %v484, 126
        %v543 = vpop.permute.xlu0 %542
        %544 = vrot.lane.b32.xlu0 %v485, 126
        %v545 = vpop.permute.xlu0 %544
        %s546 = vtos %v539
        %v547 = vstv %s546
        %s549 = vtos %v541
        %v550 = vstv %s549
        %s552 = vtos %v543
        %v553 = vstv %s552
        %s555 = vtos %v545
        %v556 = vstv %s555
        %v558 = vmul.f32 %v478, %v547
        %v559 = vmul.f32 %v479, %v550
        %v560 = vmul.f32 %v480, %v553
        %v561 = vmul.f32 %v481, %v556
        %566 = vrot.lane.b32.xlu0 %v558, 127
        %v567 = vpop.permute.xlu0 %566
        %568 = vrot.lane.b32.xlu0 %v559, 127
        %v569 = vpop.permute.xlu0 %568
        %570 = vrot.lane.b32.xlu0 %v560, 127
        %v571 = vpop.permute.xlu0 %570
        %572 = vrot.lane.b32.xlu0 %v561, 127
        %v573 = vpop.permute.xlu0 %572
        %v578 = vadd.f32 %v534, %v567
        %v579 = vadd.f32 %v535, %v569
        %v580 = vadd.f32 %v536, %v571
        %v581 = vadd.f32 %v537, %v573
        %v582 = vmax.f32 %v578, 0.0
        %v583 = vmax.f32 %v579, 0.0
        %v584 = vmax.f32 %v580, 0.0
        %v585 = vmax.f32 %v581, 0.0
        %v586 = vcombine.low %v582, %v584
        %v587 = vcombine.high %v582, %v584
        %v589 = vunpack.c.l.s4 1983009808
        %v590 = vunpack.c.0.s8 %v589
        %v591 = vlaneseq
        %v592 = vshrl.u32 %v591, 7
        %v593 = vsub.s32 %v590, %v592
        %v594 = vrot.slane %v586, %v593
        %v596 = vunpack.c.l.s4 1983009808
        %v597 = vunpack.c.0.s8 %v596
        %v598 = vlaneseq
        %v599 = vshrl.u32 %v598, 7
        %v600 = vsub.s32 %v597, %v599
        %v601 = vrot.slane %v587, %v600
        %v602 = vcombine.low %v583, %v585
        %v603 = vcombine.high %v583, %v585
        %v605 = vunpack.c.l.s4 1983009808
        %v606 = vunpack.c.0.s8 %v605
        %v607 = vlaneseq
        %v608 = vshrl.u32 %v607, 7
        %v609 = vsub.s32 %v606, %v608
        %v610 = vrot.slane %v602, %v609
        %v612 = vunpack.c.l.s4 1983009808
        %v613 = vunpack.c.0.s8 %v612
        %v614 = vlaneseq
        %v615 = vshrl.u32 %v614, 7
        %v616 = vsub.s32 %v613, %v615
        %v617 = vrot.slane %v603, %v616
        %v618 = vcombine.low %v594, %v610
        %v619 = vcombine.high %v594, %v610
        %v621 = vunpack.c.l.s4 1934713408
        %v622 = vunpack.c.0.s8 %v621
        %v623 = vlaneseq
        %v624 = vshrl.u32 %v623, 7
        %v625 = vsub.s32 %v622, %v624
        %v626 = vrot.slane %v618, %v625
        %v628 = vunpack.c.l.s4 1934713408
        %v629 = vunpack.c.0.s8 %v628
        %v630 = vlaneseq
        %v631 = vshrl.u32 %v630, 7
        %v632 = vsub.s32 %v629, %v631
        %v633 = vrot.slane %v619, %v632
        %v634 = vcombine.low %v601, %v617
        %v635 = vcombine.high %v601, %v617
        %v637 = vunpack.c.l.s4 1934713408
        %v638 = vunpack.c.0.s8 %v637
        %v639 = vlaneseq
        %v640 = vshrl.u32 %v639, 7
        %v641 = vsub.s32 %v638, %v640
        %v642 = vrot.slane %v634, %v641
        %v644 = vunpack.c.l.s4 1934713408
        %v645 = vunpack.c.0.s8 %v644
        %v646 = vlaneseq
        %v647 = vshrl.u32 %v646, 7
        %v648 = vsub.s32 %v645, %v647
        %v649 = vrot.slane %v635, %v648
        %v650 = vcombine.high %v626, 0.0
        %v651 = vcombine.high %v633, 0.0
        %v652 = vcombine.high %v642, 0.0
        %v653 = vcombine.high %v649, 0.0
        %655 = vrot.lane.b32.xlu0 %v650, 8
        %v656 = vpop.permute.xlu0 %655
        %659 = vrot.lane.b32.xlu0 %v633, 16
        %v660 = vpop.permute.xlu0 %659
        %663 = vrot.lane.b32.xlu0 %v651, 24
        %v664 = vpop.permute.xlu0 %663
        %667 = vrot.lane.b32.xlu0 %v642, 32
        %v668 = vpop.permute.xlu0 %667
        %671 = vrot.lane.b32.xlu0 %v652, 40
        %v672 = vpop.permute.xlu0 %671
        %675 = vrot.lane.b32.xlu0 %v649, 48
        %v676 = vpop.permute.xlu0 %675
        %679 = vrot.lane.b32.xlu0 %v653, 56
        %v680 = vpop.permute.xlu0 %679
        %vm682 = vcmask 64512
        %v683 = vsel %vm682, %v626, %v656
        %vm684 = vcmask 130048
        %v685 = vsel %vm684, %v683, %v660
        %vm686 = vcmask 195584
        %v687 = vsel %vm686, %v685, %v664
        %vm688 = vcmask 261120
        %v689 = vsel %vm688, %v687, %v668
        %vm690 = vcmask 326656
        %v691 = vsel %vm690, %v689, %v672
        %vm692 = vcmask 392192
        %v693 = vsel %vm692, %v691, %v676
        %vm694 = vcmask 457728
        %v695 = vsel %vm694, %v693, %v680
        %v696 = vld [vmem:[%s3] sm:$0xff]
        %698 = vset.pattern.permute.xlu0 0
        %699 = vperm.xlu0 %698, %v696
        %v700 = vpop.permute.xlu0 %699
        %v702 = vlaneseq
        %v703 = vshrl.u32 %v702, 7
        %v704 = vsub.s32 0, %v703
        %v705 = vrot.slane %v695, %v704
        %v706 = vmul.f32 %v700, %v705
        %v707 = vadd.f32 %v706, 0.0
        %708 = vset.pattern.permute.xlu0 1
        %709 = vperm.xlu0 %708, %v696
        %v710 = vpop.permute.xlu0 %709
        %v712 = vlaneseq
        %v713 = vshrl.u32 %v712, 7
        %v714 = vsub.s32 1, %v713
        %v715 = vrot.slane %v695, %v714
        %v716 = vmul.f32 %v710, %v715
        %v717 = vadd.f32 %v707, %v716
        %718 = vset.pattern.permute.xlu0 2
        %719 = vperm.xlu0 %718, %v696
        %v720 = vpop.permute.xlu0 %719
        %v722 = vlaneseq
        %v723 = vshrl.u32 %v722, 7
        %v724 = vsub.s32 2, %v723
        %v725 = vrot.slane %v695, %v724
        %v726 = vmul.f32 %v720, %v725
        %v727 = vadd.f32 %v717, %v726
        %728 = vset.pattern.permute.xlu0 3
        %729 = vperm.xlu0 %728, %v696
        %v730 = vpop.permute.xlu0 %729
        %v732 = vlaneseq
        %v733 = vshrl.u32 %v732, 7
        %v734 = vsub.s32 3, %v733
        %v735 = vrot.slane %v695, %v734
        %v736 = vmul.f32 %v730, %v735
        %v737 = vadd.f32 %v727, %v736
        %v738 = vld [vmem:[%s4] sm:$0xff]
        %740 = vset.pattern.permute.xlu0 0
        %741 = vperm.xlu0 %740, %v738
        %v742 = vpop.permute.xlu0 %741
        %v744 = vadd.f32 %v737, %v742
        %v745 = vmax.f32 %v744, 0.0
        %vm746 = vcmask 523264
        %747 = vst.msk [vmem:[%s217] sm:$0xff] %vm746, %v745
        %s748 = sand.u32 %s137, 1
        %s749 = scalar_lea.sflag [#allocation3], %s748
        %s750 = sand.u32 %s137, 1
        %s751 = smul.addr %s750, 8
        %s752 = scalar_lea.vmem [#allocation2], %s751
        // Predicated region
        $region41: #{tpu_custom_call.1} parent=39 // pred_check
          %p753 = pneg %p147
        $region42: #{tpu_custom_call.1} parent=39 // pred_check_branch
          %755 = sbr.rel (%p753) target = $region44
        $region43: #{tpu_custom_call.1} parent=39 // pred_region
          %s757 = ssub.s32 128, 128
          %758 = vsyncadd %s749, %s757
          %s759 = smul.addr %s19, 128
          %s760 = scalar_lea.hbm %s5, %s759
          %s762 = sshll.u32 %s752, 4
          %s763 = int_to_ptr.vmem [resolvable:$true] %s762
          %765 = dma.vmem_to_hbm [thread:$0]  %s763, 128, %s760, %s749
        $region44: #{tpu_custom_call.1} parent=39 // pred_fallthru
          _
      $region40: #{tpu_custom_call.1} parent=5 // pred_fallthru
        _
      %p766 = scmp.le.s32.totalorder 2, %s14
      // Predicated region
      $region45: #{tpu_custom_call.1} parent=5 // pred_check
        %p767 = pneg %p766
      $region46: #{tpu_custom_call.1} parent=5 // pred_check_branch
        %769 = sbr.rel (%p767) target = $region48
      $region47: #{tpu_custom_call.1} parent=5 // pred_region
        %s770 = ssub.s32 %s14, 2
        // Predicated region
        $region49: #{tpu_custom_call.1} parent=47 // pred_check
          %p771 = pneg %p153
        $region50: #{tpu_custom_call.1} parent=47 // pred_check_branch
          %773 = sbr.rel (%p771) target = $region52
        $region51: #{tpu_custom_call.1} parent=47 // pred_region
          %s774 = sand.u32 %s138, 1
          %s775 = scalar_lea.sflag [#allocation3], %s774
          %s776 = sand.u32 %s138, 1
          %s777 = smul.addr %s776, 8
          %s778 = scalar_lea.vmem [#allocation2], %s777
          %779 = dma.done %s775, 128
        $region52: #{tpu_custom_call.1} parent=47 // pred_fallthru
          _
      $region48: #{tpu_custom_call.1} parent=5 // pred_fallthru
        _
    $region6: #{tpu_custom_call.1} parent=1 // loop_footer
      %s18 = sadd.s32 1, %s14
    $region7: #{tpu_custom_call.1} parent=1 // loop_footer_branch
      %13 = sbr.rel target = $region3
    $region8: #{tpu_custom_call.1} parent=1 // loop_exit
      _
    %780 = vsyncpa [#allocation3], 1
    %s781 = scalar_lea.sflag [#allocation3], 1
    %782 = vsyncpa %s781, 1

</llo_original>
